<compile_context>
chip_gen: v6e
topology: v6e:2x2x1
jax: 0.10.0
libtpu: 0.0.40
codegen_flags: <defaults>
</compile_context>

<pallas_src>
import numpy as np
import jax
import jax.numpy as jnp
from jax.experimental import pallas as pl
from jax.experimental.pallas import tpu as pltpu

BN_EPS = 1e-5


def _round_up(n, m):
    return (n + m - 1) // m * m


def _cdiv(a, b):
    return -(-a // b)


def fused_affine_kernel(x_ref, w_ref, b_ref, o_ref):
    # One MXU matmul (bf16 operands, f32 accumulate) + bias add, bf16 store.
    x = x_ref[...].astype(jnp.bfloat16)          # no-op if x already bf16
    acc = jnp.dot(x, w_ref[...], preferred_element_type=jnp.float32)
    o_ref[...] = (acc + b_ref[...]).astype(o_ref.dtype)


def _weight_norm(v, g):
    """PyTorch nn.utils.weight_norm: w = g * v / ||v|| (norm over dims != 0)."""
    axes = tuple(range(1, v.ndim))
    norm = jnp.sqrt(jnp.sum(v * v, axis=axes, keepdims=True))
    g = g.reshape((-1,) + (1,) * (v.ndim - 1))
    return g * v / norm


def stacking_cnn_forward(x, params):
    """x: (B, C, K) float32, NCL like PyTorch Conv1d input. Returns (B, C) f32."""
    B, C, K = x.shape
    CK = C * K

    # ---- one-time weight fold (tiny tensors, plain XLA) ----------------------
    wc = _weight_norm(params["conv_v"], params["conv_g"])     # (C, C, K)
    wd = _weight_norm(params["dense_v"], params["dense_g"])   # (C, C)
    wc_t = wc.reshape(C, CK).T                                 # (CK, C)
    wd_t = wd.T                                                # (C, C)

    bn_scale = params["bn_gamma"] * jax.lax.rsqrt(params["bn_var"] + BN_EPS)
    bn_shift = params["bn_beta"] - params["bn_mean"] * bn_scale

    w_fused = (wc_t * bn_scale[None, :]) @ wd_t                # (CK, C)
    b_fused = (params["conv_b"] * bn_scale + bn_shift) @ wd_t + params["dense_b"]

    # ---- padding only where required ------------------------------------------
    CK_pad = _round_up(CK, 128)           # contraction dim (MXU / lane aligned)
    N_pad = _round_up(C, 128)             # lane-dense output (unmasked vst)

    x_flat = x.reshape(B, CK)             # free: last-two-dims reshape, no copy
    if CK_pad != CK:
        # Zero-pad contraction (needed for correctness vs. padded weight) and
        # fold the bf16 cast into the same pass to halve kernel read bytes.
        x_in = jnp.pad(x_flat, ((0, 0), (0, CK_pad - CK))).astype(jnp.bfloat16)
    else:
        # No wrapper copy at all: kernel reads f32 x and casts in-register.
        x_in = x_flat

    w_p = jnp.pad(w_fused, ((0, CK_pad - CK), (0, N_pad - C))).astype(jnp.bfloat16)
    b_p = jnp.pad(b_fused, (0, N_pad - C)).reshape(1, N_pad).astype(jnp.float32)

    # ---- batch tiling: no batch pad, >=2 grid steps when possible -------------
    TM = min(1024, max(8, _round_up(_cdiv(B, 2), 8)))
    x_item = jnp.dtype(x_in.dtype).itemsize

    def vmem_est(tm):
        return (tm * CK_pad * x_item * 2        # x tile, double-buffered
                + CK_pad * N_pad * 2            # resident bf16 weight, Buffered(1)
                + N_pad * 4                     # resident f32 bias
                + tm * N_pad * 2 * 2)           # bf16 out tile, double-buffered

    while vmem_est(TM) > (24 << 20) and TM > 8:  # keep well inside v7x's 64 MiB
        TM = max(8, _round_up(TM // 2, 8))

    grid = (_cdiv(B, TM),)                      # partial last block masked by Pallas
    vmem_limit = int(min(max(32 << 20, 2 * vmem_est(TM)), 96 << 20))

    cost = pl.CostEstimate(
        flops=2 * B * CK_pad * N_pad,
        transcendentals=0,
        bytes_accessed=(x_in.size * x_item
                        + w_p.size * 2
                        + b_p.size * 4
                        + B * N_pad * 2),
    )

    out = pl.pallas_call(
        fused_affine_kernel,
        out_shape=jax.ShapeDtypeStruct((B, N_pad), jnp.bfloat16),
        grid_spec=pltpu.PrefetchScalarGridSpec(
            num_scalar_prefetch=0,
            grid=grid,
            in_specs=[
                # batch-tiled activation
                pl.BlockSpec((TM, CK_pad), lambda i: (i, 0)),
                # VMEM-resident weight / bias: constant index_map -> single buffer
                pl.BlockSpec((CK_pad, N_pad), lambda i: (0, 0),
                             pipeline_mode=pl.Buffered(1)),
                pl.BlockSpec((1, N_pad), lambda i: (0, 0),
                             pipeline_mode=pl.Buffered(1)),
            ],
            out_specs=pl.BlockSpec((TM, N_pad), lambda i: (i, 0)),
        ),
        compiler_params=pltpu.CompilerParams(
            dimension_semantics=("parallel",),
            vmem_limit_bytes=vmem_limit,
        ),
        cost_estimate=cost,
    )(x_in, w_p, b_p)

    # Upcast only after slicing away the lane padding.
    return out[:, :C].astype(jnp.float32)


def reference_forward(x, params):
    """Pure-JAX f32 reference (unfused, same eval-mode semantics)."""
    wc = _weight_norm(params["conv_v"], params["conv_g"])
    wd = _weight_norm(params["dense_v"], params["dense_g"])
    h = jnp.einsum("bck,ock->bo", x, wc) + params["conv_b"]
    h = (h - params["bn_mean"]) / jnp.sqrt(params["bn_var"] + BN_EPS)
    h = h * params["bn_gamma"] + params["bn_beta"]
    y = h @ wd.T + params["dense_b"]
    return y


def init_params(key, out_dim, kernel_size):
    ks = jax.random.split(key, 6)
    conv_v = jax.random.normal(ks[0], (out_dim, out_dim, kernel_size), jnp.float32) * 0.05
    dense_v = jax.random.normal(ks[1], (out_dim, out_dim), jnp.float32) * 0.05
    # weight_norm init: g = ||v|| (so initially w == v)
    conv_g = jnp.sqrt(jnp.sum(conv_v * conv_v, axis=(1, 2)))
    dense_g = jnp.sqrt(jnp.sum(dense_v * dense_v, axis=1))
    return {
        "conv_v": conv_v,
        "conv_g": conv_g,
        "conv_b": jax.random.normal(ks[2], (out_dim,), jnp.float32) * 0.01,
        "dense_v": dense_v,
        "dense_g": dense_g,
        "dense_b": jax.random.normal(ks[3], (out_dim,), jnp.float32) * 0.01,
        "bn_gamma": 1.0 + 0.1 * jax.random.normal(ks[4], (out_dim,), jnp.float32),
        "bn_beta": 0.1 * jax.random.normal(ks[5], (out_dim,), jnp.float32),
        "bn_mean": jnp.zeros((out_dim,), jnp.float32),
        "bn_var": jnp.ones((out_dim,), jnp.float32),
    }


if __name__ == "__main__":
    B, C, K = 8, 64, 2   # (batch, out_dim channels, length == kernel_size)
    key = jax.random.PRNGKey(0)
    kx, kp = jax.random.split(key)
    x = jax.random.normal(kx, (B, C, K), jnp.float32)
    params = init_params(kp, C, K)

    fwd = jax.jit(stacking_cnn_forward)
    out = jax.block_until_ready(fwd(x, params))

    ref = reference_forward(x, params)
    assert out.shape == (B, C), out.shape
    # bf16 MXU operands / bf16 output -> loosened tolerance vs. f32 reference.
    np.testing.assert_allclose(np.asarray(out), np.asarray(ref), rtol=2e-2, atol=2e-2)
    print("KERNEL_OK")
</pallas_src>

<mosaic_0001>
module attributes {stable_mosaic.version = 11 : i64} {
  func.func @fused_affine_kernel(%arg0: i32, %arg1: memref<8x128xf32, #tpu.memory_space<vmem>>, %arg2: memref<128x128xbf16, #tpu.memory_space<vmem>>, %arg3: memref<1x128xf32, #tpu.memory_space<vmem>>, %arg4: memref<8x128xbf16, #tpu.memory_space<vmem>>) attributes {dimension_semantics = [#tpu.dimension_semantics<parallel>], iteration_bounds = array<i64: 1>, scalar_prefetch = 0 : i64, scratch_operands = 0 : i64, tpu.core_type = #tpu.core_type<tc>, window_params = [{transform_indices = @transform_0, window_bounds = array<i64: 8, 128>}, {pipeline_mode = #tpu.pipeline_mode<synchronous>, transform_indices = @transform_1, window_bounds = array<i64: 128, 128>}, {pipeline_mode = #tpu.pipeline_mode<synchronous>, transform_indices = @transform_2, window_bounds = array<i64: 1, 128>}, {transform_indices = @transform_3, window_bounds = array<i64: 8, 128>}]} {
    %c0 = arith.constant 0 : index
    %c0_0 = arith.constant 0 : index
    %0 = vector.load %arg1[%c0, %c0_0] : memref<8x128xf32, #tpu.memory_space<vmem>>, vector<8x128xf32>
    %1 = arith.truncf %0 : vector<8x128xf32> to vector<8x128xbf16>
    %c0_1 = arith.constant 0 : index
    %c0_2 = arith.constant 0 : index
    %2 = vector.load %arg2[%c0_1, %c0_2] : memref<128x128xbf16, #tpu.memory_space<vmem>>, vector<128x128xbf16>
    %cst = arith.constant dense<0.000000e+00> : vector<8x128xf32>
    %3 = tpu.matmul %1, %2, %cst {dimension_numbers = #tpu.dot_dimension_numbers<[1], [0], [0], [1], [0, 0, 1, 1], [], []>} : vector<8x128xbf16>, vector<128x128xbf16>, vector<8x128xf32> -> vector<8x128xf32>
    %c0_3 = arith.constant 0 : index
    %c0_4 = arith.constant 0 : index
    %4 = vector.load %arg3[%c0_3, %c0_4] : memref<1x128xf32, #tpu.memory_space<vmem>>, vector<1x128xf32>
    %5 = vector.broadcast %4 : vector<1x128xf32> to vector<8x128xf32>
    %6 = arith.addf %3, %5 : vector<8x128xf32>
    %7 = arith.truncf %6 : vector<8x128xf32> to vector<8x128xbf16>
    %c0_5 = arith.constant 0 : index
    %c0_6 = arith.constant 0 : index
    %8 = vector.load %arg4[%c0_5, %c0_6] : memref<8x128xbf16, #tpu.memory_space<vmem>>, vector<8x128xbf16>
    tpu.vector_store %arg4[%c0_5, %c0_6], %7 {strides = array<i32>} : memref<8x128xbf16, #tpu.memory_space<vmem>>, vector<8x128xbf16>,
    return
  }
  func.func @transform_0(%arg0: i32) -> (i32, i32) {
    %c0_i32 = arith.constant 0 : i32
    %c0_i32_0 = arith.constant 0 : i32
    return %arg0, %c0_i32 : i32, i32
  }
  func.func @transform_1(%arg0: i32) -> (i32, i32) {
    %c0_i32 = arith.constant 0 : i32
    %c0_i32_0 = arith.constant 0 : i32
    %c0_i32_1 = arith.constant 0 : i32
    return %c0_i32, %c0_i32_0 : i32, i32
  }
  func.func @transform_2(%arg0: i32) -> (i32, i32) {
    %c0_i32 = arith.constant 0 : i32
    %c0_i32_0 = arith.constant 0 : i32
    %c0_i32_1 = arith.constant 0 : i32
    return %c0_i32, %c0_i32_0 : i32, i32
  }
  func.func @transform_3(%arg0: i32) -> (i32, i32) {
    %c0_i32 = arith.constant 0 : i32
    %c0_i32_0 = arith.constant 0 : i32
    return %arg0, %c0_i32 : i32, i32
  }
}

</mosaic_0001>

<llo_original>
// kernel: stacking_cnn_forward.1
$region0: #{stacking_cnn_forward.1}
  #allocation0 [shape = 'u32[]', space=smem, size = 0x4, offset = 0x4, fixed_abs, tag = 'smem constant byte address 0x4 - core index']
  #allocation1 [shape = 'u32[144,128]{1,0:T(1,128)}', space=vmem, size = 0x12000, scoped, tag = 'internal scratch']
  %s0 = inlined_call_operand.vmem [shape: f32[8,128], index: 0, kind: input, shape index: {}]
  %s1 = inlined_call_operand.vmem [shape: bf16[128,128], index: 1, kind: input, shape index: {}]
  %s2 = inlined_call_operand.vmem [shape: f32[1,128], index: 2, kind: input, shape index: {}]
  %s3 = inlined_call_operand.vmem [shape: bf16[8,128], index: 3, kind: output, shape index: {}]
  %s4 = sld [smem:[#allocation0]]
  $region22: #{stacking_cnn_forward.1} parent=0
    _
  %s6 = ssub.s32 1, %s4
  %s7 = scalar_select 0, %s6, %s4
  // Predicated region
  $region2: #{stacking_cnn_forward.1} parent=0 // pred_check
    _
  $region3: #{stacking_cnn_forward.1} parent=0 // pred_check_branch
    %9 = sbr.rel (0) target = $region5
  $region4: #{stacking_cnn_forward.1} parent=0 // pred_region
    _
  $region5: #{stacking_cnn_forward.1} parent=0 // pred_fallthru
    _
  // Predicated region
  $region6: #{stacking_cnn_forward.1} parent=0 // pred_check
    _
  $region7: #{stacking_cnn_forward.1} parent=0 // pred_check_branch
    %11 = sbr.rel (0) target = $region9
  $region8: #{stacking_cnn_forward.1} parent=0 // pred_region
    _
  $region9: #{stacking_cnn_forward.1} parent=0 // pred_fallthru
    _
  // Predicated region
  $region10: #{stacking_cnn_forward.1} parent=0 // pred_check
    _
  $region11: #{stacking_cnn_forward.1} parent=0 // pred_check_branch
    %13 = sbr.rel (0) target = $region13
  $region12: #{stacking_cnn_forward.1} parent=0 // pred_region
    _
  $region13: #{stacking_cnn_forward.1} parent=0 // pred_fallthru
    _
  %v15 = vld [vmem:[%s0] sm:$0xff]
  %v16 = vpack.c.bf16 %v15, %v15
  %v17 = vld [vmem:[%s1] sm:$0xf]
  %v18 = vld [vmem:[%s1 + $0x4] sm:$0xf]
  %v19 = vld [vmem:[%s1 + $0x8] sm:$0xf]
  %v20 = vld [vmem:[%s1 + $0xc] sm:$0xf]
  %v21 = vld [vmem:[%s1 + $0x10] sm:$0xf]
  %v22 = vld [vmem:[%s1 + $0x14] sm:$0xf]
  %v23 = vld [vmem:[%s1 + $0x18] sm:$0xf]
  %v24 = vld [vmem:[%s1 + $0x1c] sm:$0xf]
  %v25 = vld [vmem:[%s1 + $0x20] sm:$0xf]
  %v26 = vld [vmem:[%s1 + $0x24] sm:$0xf]
  %v27 = vld [vmem:[%s1 + $0x28] sm:$0xf]
  %v28 = vld [vmem:[%s1 + $0x2c] sm:$0xf]
  %v29 = vld [vmem:[%s1 + $0x30] sm:$0xf]
  %v30 = vld [vmem:[%s1 + $0x34] sm:$0xf]
  %v31 = vld [vmem:[%s1 + $0x38] sm:$0xf]
  %v32 = vld [vmem:[%s1 + $0x3c] sm:$0xf]
  %v33 = vld [vmem:[%s2] sm:$0x1]
  %v35 = vlaneseq
  %v36 = vshrl.u32 %v35, 7
  %v37 = vsub.s32 0, %v36
  %v38 = vrot.slane %v33, %v37
  %v56 = vunpack.c.l.b16 %v17
  %v57 = vunpack.c.l.b16 %v18
  %v58 = vunpack.c.l.b16 %v19
  %v59 = vunpack.c.l.b16 %v20
  %v60 = vunpack.c.l.b16 %v21
  %v61 = vunpack.c.l.b16 %v22
  %v62 = vunpack.c.l.b16 %v23
  %v63 = vunpack.c.l.b16 %v24
  %v64 = vunpack.c.l.b16 %v25
  %v65 = vunpack.c.l.b16 %v26
  %v66 = vunpack.c.l.b16 %v27
  %v67 = vunpack.c.l.b16 %v28
  %v68 = vunpack.c.l.b16 %v29
  %v69 = vunpack.c.l.b16 %v30
  %v70 = vunpack.c.l.b16 %v31
  %v71 = vunpack.c.l.b16 %v32
  %v72 = vpack.c.b16 %v57, %v56
  %v73 = vpack.c.b16 %v59, %v58
  %v74 = vpack.c.b16 %v61, %v60
  %v75 = vpack.c.b16 %v63, %v62
  %v76 = vpack.c.b16 %v65, %v64
  %v77 = vpack.c.b16 %v67, %v66
  %v78 = vpack.c.b16 %v69, %v68
  %v79 = vpack.c.b16 %v71, %v70
  %88 = vmatprep.subr.bf16.mxu0 0
  %89 = vmatpush1.bf16.msra.mxu0 %v79
  %90 = vmatprep.subr.bf16.mxu0 0
  %91 = vmatpush1.bf16.msra.mxu0 %v78
  %92 = vmatprep.subr.bf16.mxu0 0
  %93 = vmatpush1.bf16.msra.mxu0 %v77
  %94 = vmatprep.subr.bf16.mxu0 0
  %95 = vmatpush1.bf16.msra.mxu0 %v76
  %96 = vmatprep.subr.bf16.mxu0 0
  %97 = vmatpush1.bf16.msra.mxu0 %v75
  %98 = vmatprep.subr.bf16.mxu0 0
  %99 = vmatpush1.bf16.msra.mxu0 %v74
  %100 = vmatprep.subr.bf16.mxu0 0
  %101 = vmatpush1.bf16.msra.mxu0 %v73
  %102 = vmatprep.subr.bf16.mxu0 0
  %103 = vmatpush1.bf16.msra.mxu0 %v72
  %104 = vmatprep.subr.bf16.mxu0 0
  %105 = vmatpush2.bf16.msra.mxu0 0
  %106 = vmatprep.subr.bf16.mxu0 0
  %107 = vmatpush2.bf16.msra.mxu0 0
  %108 = vmatprep.subr.bf16.mxu0 0
  %109 = vmatpush2.bf16.msra.mxu0 0
  %110 = vmatprep.subr.bf16.mxu0 0
  %111 = vmatpush2.bf16.msra.mxu0 0
  %112 = vmatprep.subr.bf16.mxu0 0
  %113 = vmatpush2.bf16.msra.mxu0 0
  %114 = vmatprep.subr.bf16.mxu0 0
  %115 = vmatpush2.bf16.msra.mxu0 0
  %116 = vmatprep.subr.bf16.mxu0 0
  %117 = vmatpush2.bf16.msra.mxu0 0
  %118 = vmatprep.subr.bf16.mxu0 0
  %119 = vmatpush2.bf16.msra.mxu0 0
  %120 = vmatprep.mubr.bf16.mxu0 0
  %121 = vmatmul.mubr.bf16.gmra.mxu0 %v16
  %v122 = vpop.f32.mrf.mxu0
  %v123 = vadd.f32 %v38, %v122
  %v124 = vpop.f32.mrf.mxu0
  %v125 = vpop.f32.mrf.mxu0
  %v126 = vpop.f32.mrf.mxu0
  %127 = vdwg.mxu0
  %v128 = vpack.c.bf16 %v123, %v123
  %129 = vst [vmem:[%s3] sm:$0xf] %v128
  // Predicated region
  $region14: #{stacking_cnn_forward.1} parent=0 // pred_check
    _
  $region15: #{stacking_cnn_forward.1} parent=0 // pred_check_branch
    %131 = sbr.rel (0) target = $region17
  $region16: #{stacking_cnn_forward.1} parent=0 // pred_region
    _
  $region17: #{stacking_cnn_forward.1} parent=0 // pred_fallthru
    _
  // Predicated region
  $region18: #{stacking_cnn_forward.1} parent=0 // pred_check
    _
  $region19: #{stacking_cnn_forward.1} parent=0 // pred_check_branch
    %133 = sbr.rel (0) target = $region21
  $region20: #{stacking_cnn_forward.1} parent=0 // pred_region
    _
  $region21: #{stacking_cnn_forward.1} parent=0 // pred_fallthru
    _

</llo_original>
